<compile_context>
chip_gen: v5e
topology: v5e:2x2
jax: 0.10.0
libtpu: 0.0.40
codegen_flags: <defaults>
</compile_context>

<pallas_src>
import math

import jax
import jax.numpy as jnp
from jax.experimental import pallas as pl
from jax.experimental.pallas import tpu as pltpu


# ----------------------------- in-kernel math ------------------------------

def _erf(z):
    # Abramowitz & Stegun 7.1.26, |error| < 1.5e-7 (float32-exact here).
    p = 0.3275911
    a1, a2, a3, a4, a5 = (0.254829592, -0.284496736, 1.421413741,
                          -1.453152027, 1.061405429)
    sgn = jnp.where(z >= 0.0, 1.0, -1.0)
    az = jnp.abs(z)
    # Exact reciprocal (approx=False): error budget of erf does not allow the
    # EUP approximate form; still keeps the divide cheap.
    t = pl.reciprocal(1.0 + p * az, approx=False)
    poly = ((((a5 * t + a4) * t + a3) * t + a2) * t + a1) * t
    return sgn * (1.0 - poly * jnp.exp(-az * az))


def _gelu_exact(x):
    # 0.5 * x * (1 + erf(x / sqrt(2)))  -- matches torch.nn.GELU() (exact form).
    return 0.5 * x * (1.0 + _erf(x * 0.7071067811865476))


# --------------------------------- kernel ----------------------------------

def _mlp_kernel(x_ref, w1t_ref, b1_ref, w2t_ref, b2_ref, o_ref, acc_ref):
    i = pl.program_id(1)

    @pl.when(i == 0)
    def _init():
        # Start the accumulator at the output bias (broadcast over rows).
        acc_ref[...] = jnp.zeros_like(acc_ref) + b2_ref[...].astype(jnp.float32)

    # h = GELU(x @ W1^T + b1) for this (tm, ti) slab, f32 accumulation on MXU.
    h = jnp.dot(x_ref[...], w1t_ref[...], preferred_element_type=jnp.float32)
    h = _gelu_exact(h + b1_ref[...].astype(jnp.float32))

    # Second matmul: acc += h @ W2^T[i_slab, :]  (h downcast to weight dtype).
    acc_ref[...] += jnp.dot(h.astype(w2t_ref.dtype), w2t_ref[...],
                            preferred_element_type=jnp.float32)

    @pl.when(i == pl.num_programs(1) - 1)
    def _finalize():
        o_ref[...] = acc_ref[...].astype(o_ref.dtype)


# -------------------------------- wrapper ----------------------------------

def _round_up(n, m):
    return ((n + m - 1) // m) * m


def _cdiv(a, b):
    return -(-a // b)


def _vmem_capacity_bytes():
    """Physical VMEM per TensorCore (fallback: 64 MiB, safe on every gen)."""
    try:
        return int(pltpu.get_tpu_info().vmem_capacity_bytes)
    except Exception:
        return 64 * 1024 * 1024


def _select_tiles(m, hidden, inter, in_bytes, out_bytes, vmem_cap):
    """Pick (tm, m_pad, grid_m, ti) under a VMEM budget, favouring large tm.

    Per-grid-step footprint (double-buffered pipelined blocks + f32 acc):
      x: 2*in_bytes*tm*hidden    out: 2*out_bytes*tm*hidden   acc: 4*tm*hidden
      W1^T + W2^T: 4*in_bytes*hidden*ti    biases: ~8*(ti + hidden)
    """
    row_mult = 16 if in_bytes < 4 else 8          # bf16 needs (16,128) min tile
    m_al = _round_up(m, row_mult)
    budget = (vmem_cap * 3) // 4                  # headroom for compiler internals

    per_row = hidden * (2 * in_bytes + 2 * out_bytes + 4)
    bias_cost = 2 * 4 * (hidden + 128)
    min_wcost = 4 * in_bytes * hidden * 128       # smallest (ti=128) weight slabs

    # Largest tm the budget supports with the minimal weight slab; tm is the
    # lever that reduces HBM weight re-streaming, so grow it first.
    tm_cap = max(row_mult, (budget - min_wcost - bias_cost) // per_row)
    tm_target = min(1024 if in_bytes < 4 else 512, tm_cap)
    if tm_target >= 128:
        tm_target = (tm_target // 128) * 128
    else:
        tm_target = max(row_mult, (tm_target // row_mult) * row_mult)

    if m_al <= tm_target:
        grid_m, tm = 1, m_al
        # Give v7x's second TensorCore work for large single-tile batches
        # (negligible cost on 1-TC chips; each tile stays >= 256 rows).
        if m_al >= 512:
            grid_m = 2
            tm = _round_up(_cdiv(m_al, 2), row_mult)
    else:
        # Bound padding waste: split into the fewest tiles <= tm_target.
        grid_m = _cdiv(m_al, tm_target)
        tm = _round_up(_cdiv(m_al, grid_m), row_mult)
    m_pad = tm * grid_m

    # Maximize ti (divisor of inter, 128-aligned) within the remaining budget.
    rem = budget - tm * per_row - bias_cost
    if inter <= 128 or inter % 128 != 0:
        ti_cands = [inter]
    else:
        ti_cands = [t for t in (2048, 1024, 512, 256, 128) if inter % t == 0]
    ti = ti_cands[-1]
    for t in ti_cands:
        if 4 * in_bytes * hidden * t <= rem:
            ti = t
            break
    return tm, m_pad, grid_m, ti


def mlp_forward(x, w1, b1, w2, b2, *, compute_dtype=jnp.bfloat16):
    """Fused Pallas MLP: GELU(x @ w1.T + b1) @ w2.T + b2.

    Weight layout matches torch.nn.Linear:
      w1: (intermediate, hidden)   b1: (intermediate,)
      w2: (hidden, intermediate)   b2: (hidden,)

    compute_dtype: dtype of the matmul operands (default bf16; accumulation is
    always f32).  Pass jnp.float32 (or None to keep x.dtype) for exact f32.
    """
    orig_shape = x.shape
    hidden = orig_shape[-1]
    inter = w1.shape[0]
    assert w1.shape == (inter, hidden)
    assert w2.shape == (hidden, inter)

    out_dtype = x.dtype
    if compute_dtype is None:
        compute_dtype = x.dtype
    in_bytes = jnp.dtype(compute_dtype).itemsize
    out_bytes = jnp.dtype(out_dtype).itemsize

    x2 = x.reshape(-1, hidden)
    m = x2.shape[0]

    vmem_cap = _vmem_capacity_bytes()
    tm, m_pad, grid_m, ti = _select_tiles(m, hidden, inter,
                                          in_bytes, out_bytes, vmem_cap)
    if m_pad != m:
        x2 = jnp.pad(x2, ((0, m_pad - m), (0, 0)))
    grid = (grid_m, inter // ti)

    # Pre-transpose weights once (layout plumbing outside the kernel) so both
    # matmuls are plain row-major MXU dots; cast matmul operands to the
    # compute dtype (f32 accumulation preserved in-kernel).
    x2 = x2.astype(compute_dtype)
    w1t = w1.T.astype(compute_dtype)               # (hidden, inter)
    w2t = w2.T.astype(compute_dtype)               # (inter, hidden)
    b1r = b1.reshape(1, inter).astype(jnp.float32)
    b2r = b2.reshape(1, hidden).astype(jnp.float32)

    # Explicit scoped-VMEM limit from the actual footprint (+25% + 2 MiB),
    # clamped to physical capacity — required at Pythia scale on every gen.
    footprint = (2 * in_bytes * tm * hidden        # x block (double-buffered)
                 + 2 * out_bytes * tm * hidden     # out block (double-buffered)
                 + 4 * tm * hidden                 # f32 accumulator scratch
                 + 4 * in_bytes * hidden * ti      # W1^T + W2^T (double-buffered)
                 + 2 * 4 * (ti + hidden))          # bias blocks
    vmem_limit = int(min(vmem_cap,
                         max(16 * 1024 * 1024, footprint * 5 // 4 + (2 << 20))))

    out = pl.pallas_call(
        _mlp_kernel,
        out_shape=jax.ShapeDtypeStruct((m_pad, hidden), out_dtype),
        grid_spec=pltpu.PrefetchScalarGridSpec(
            num_scalar_prefetch=0,
            grid=grid,
            in_specs=[
                pl.BlockSpec((tm, hidden), lambda mi, ii: (mi, 0)),   # x rows
                pl.BlockSpec((hidden, ti), lambda mi, ii: (0, ii)),   # W1^T slab
                pl.BlockSpec((1, ti),      lambda mi, ii: (0, ii)),   # b1 slab
                pl.BlockSpec((ti, hidden), lambda mi, ii: (ii, 0)),   # W2^T slab
                pl.BlockSpec((1, hidden),  lambda mi, ii: (0, 0)),    # b2
            ],
            out_specs=pl.BlockSpec((tm, hidden), lambda mi, ii: (mi, 0)),
            scratch_shapes=[pltpu.VMEM((tm, hidden), jnp.float32)],
        ),
        compiler_params=pltpu.CompilerParams(
            dimension_semantics=("parallel", "arbitrary"),
            vmem_limit_bytes=vmem_limit),
    )(x2, w1t, b1r, w2t, b2r)

    if m_pad != m:
        out = out[:m]
    return out.reshape(orig_shape)


class MLP:
    """JAX/Pallas port of the Pythia MLP module (Linear -> GELU -> Linear)."""

    def __init__(self, hidden_size, intermediate_size, key,
                 dtype=jnp.float32, compute_dtype=jnp.bfloat16):
        k1, k2, k3, k4 = jax.random.split(key, 4)
        # torch.nn.Linear default init: U(-1/sqrt(fan_in), 1/sqrt(fan_in)).
        s1 = 1.0 / math.sqrt(hidden_size)
        s2 = 1.0 / math.sqrt(intermediate_size)
        self.w1 = jax.random.uniform(k1, (intermediate_size, hidden_size), dtype, -s1, s1)
        self.b1 = jax.random.uniform(k2, (intermediate_size,), dtype, -s1, s1)
        self.w2 = jax.random.uniform(k3, (hidden_size, intermediate_size), dtype, -s2, s2)
        self.b2 = jax.random.uniform(k4, (hidden_size,), dtype, -s2, s2)
        self.compute_dtype = compute_dtype

    def __call__(self, x):
        return mlp_forward(x, self.w1, self.b1, self.w2, self.b2,
                           compute_dtype=self.compute_dtype)


if __name__ == "__main__":
    key = jax.random.PRNGKey(0)
    batch, seq, hidden = 2, 8, 32
    intermediate = 4 * hidden  # Pythia-style 4h = 128

    kx, kp = jax.random.split(key)
    x = jax.random.normal(kx, (batch, seq, hidden), dtype=jnp.float32)

    mlp = MLP(hidden, intermediate, kp)

    # Pure-JAX reference (exact erf GELU, matching torch.nn.GELU()).
    h_ref = x.reshape(-1, hidden) @ mlp.w1.T + mlp.b1
    h_ref = jax.nn.gelu(h_ref, approximate=False)
    y_ref = (h_ref @ mlp.w2.T + mlp.b2).reshape(batch, seq, hidden)

    # 1) Exact-dtype path (f32 matmuls) -- tight tolerance vs. the module.
    y32 = jax.block_until_ready(
        mlp_forward(x, mlp.w1, mlp.b1, mlp.w2, mlp.b2, compute_dtype=jnp.float32))
    assert y32.shape == (batch, seq, hidden)
    err32 = float(jnp.max(jnp.abs(y32 - y_ref)))
    assert jnp.allclose(y32, y_ref, atol=1e-4, rtol=1e-4), err32

    # 2) Default perf path (bf16 matmul operands, f32 accumulation).
    ybf = jax.block_until_ready(mlp(x))
    assert ybf.shape == (batch, seq, hidden)
    errbf = float(jnp.max(jnp.abs(ybf.astype(jnp.float32) - y_ref)))
    assert jnp.allclose(ybf.astype(jnp.float32), y_ref, atol=7.5e-2, rtol=7.5e-2), errbf

    print("KERNEL_OK")
</pallas_src>

<mosaic_0001>
module attributes {stable_mosaic.version = 11 : i64} {
  func.func @_mlp_kernel(%arg0: i32, %arg1: i32, %arg2: memref<16x32xf32, #tpu.memory_space<vmem>>, %arg3: memref<32x128xf32, #tpu.memory_space<vmem>>, %arg4: memref<1x128xf32, #tpu.memory_space<vmem>>, %arg5: memref<128x32xf32, #tpu.memory_space<vmem>>, %arg6: memref<1x32xf32, #tpu.memory_space<vmem>>, %arg7: memref<16x32xf32, #tpu.memory_space<vmem>>, %arg8: memref<16x32xf32, #tpu.memory_space<vmem>>) attributes {dimension_semantics = [#tpu.dimension_semantics<parallel>, #tpu.dimension_semantics<arbitrary>], iteration_bounds = array<i64: 1, 1>, scalar_prefetch = 0 : i64, scratch_operands = 1 : i64, tpu.core_type = #tpu.core_type<tc>, window_params = [{transform_indices = @transform_0, window_bounds = array<i64: 16, 32>}, {transform_indices = @transform_1, window_bounds = array<i64: 32, 128>}, {transform_indices = @transform_2, window_bounds = array<i64: 1, 128>}, {transform_indices = @transform_3, window_bounds = array<i64: 128, 32>}, {pipeline_mode = #tpu.pipeline_mode<synchronous>, transform_indices = @transform_4, window_bounds = array<i64: 1, 32>}, {transform_indices = @transform_5, window_bounds = array<i64: 16, 32>}]} {
    %c0_i32 = arith.constant 0 : i32
    %0 = arith.cmpi eq, %arg1, %c0_i32 : i32
    %1 = arith.extui %0 : i1 to i32
    %c0_i32_0 = arith.constant 0 : i32
    %2 = arith.cmpi ne, %1, %c0_i32_0 : i32
    scf.if %2 {
      %cst_30 = arith.constant 0.000000e+00 : f32
      %57 = vector.broadcast %cst_30 : f32 to vector<16x32xf32>
      %c0_31 = arith.constant 0 : index
      %c0_32 = arith.constant 0 : index
      %58 = vector.load %arg6[%c0_31, %c0_32] : memref<1x32xf32, #tpu.memory_space<vmem>>, vector<1x32xf32>
      %59 = vector.broadcast %58 : vector<1x32xf32> to vector<16x32xf32>
      %60 = arith.addf %57, %59 : vector<16x32xf32>
      %c0_33 = arith.constant 0 : index
      %c0_34 = arith.constant 0 : index
      %61 = vector.load %arg8[%c0_33, %c0_34] : memref<16x32xf32, #tpu.memory_space<vmem>>, vector<16x32xf32>
      tpu.vector_store %arg8[%c0_33, %c0_34], %60 {strides = array<i32>} : memref<16x32xf32, #tpu.memory_space<vmem>>, vector<16x32xf32>,
    } else {
    }
    %c0 = arith.constant 0 : index
    %c0_1 = arith.constant 0 : index
    %3 = vector.load %arg2[%c0, %c0_1] : memref<16x32xf32, #tpu.memory_space<vmem>>, vector<16x32xf32>
    %c0_2 = arith.constant 0 : index
    %c0_3 = arith.constant 0 : index
    %4 = vector.load %arg3[%c0_2, %c0_3] : memref<32x128xf32, #tpu.memory_space<vmem>>, vector<32x128xf32>
    %cst = arith.constant dense<0.000000e+00> : vector<16x128xf32>
    %5 = tpu.matmul %3, %4, %cst {dimension_numbers = #tpu.dot_dimension_numbers<[1], [0], [0], [1], [0, 0, 1, 1], [], []>} : vector<16x32xf32>, vector<32x128xf32>, vector<16x128xf32> -> vector<16x128xf32>
    %c0_4 = arith.constant 0 : index
    %c0_5 = arith.constant 0 : index
    %6 = vector.load %arg4[%c0_4, %c0_5] : memref<1x128xf32, #tpu.memory_space<vmem>>, vector<1x128xf32>
    %7 = vector.broadcast %6 : vector<1x128xf32> to vector<16x128xf32>
    %8 = arith.addf %5, %7 : vector<16x128xf32>
    %cst_6 = arith.constant 5.000000e-01 : f32
    %9 = vector.broadcast %cst_6 : f32 to vector<16x128xf32>
    %10 = arith.mulf %9, %8 : vector<16x128xf32>
    %cst_7 = arith.constant 0.707106769 : f32
    %11 = vector.broadcast %cst_7 : f32 to vector<16x128xf32>
    %12 = arith.mulf %8, %11 : vector<16x128xf32>
    %cst_8 = arith.constant 0.000000e+00 : f32
    %13 = vector.broadcast %cst_8 : f32 to vector<16x128xf32>
    %14 = arith.cmpf oge, %12, %13 : vector<16x128xf32>
    %cst_9 = arith.constant 1.000000e+00 : f32
    %cst_10 = arith.constant -1.000000e+00 : f32
    %15 = vector.broadcast %cst_9 : f32 to vector<16x128xf32>
    %16 = vector.broadcast %cst_10 : f32 to vector<16x128xf32>
    %17 = arith.select %14, %15, %16 : vector<16x128xi1>, vector<16x128xf32>
    %18 = math.absf %12 : vector<16x128xf32>
    %cst_11 = arith.constant 0.327591091 : f32
    %19 = vector.broadcast %cst_11 : f32 to vector<16x128xf32>
    %20 = arith.mulf %19, %18 : vector<16x128xf32>
    %cst_12 = arith.constant 1.000000e+00 : f32
    %21 = vector.broadcast %cst_12 : f32 to vector<16x128xf32>
    %22 = arith.addf %21, %20 : vector<16x128xf32>
    %23 = tpu.reciprocal %22 : vector<16x128xf32> -> vector<16x128xf32>
    %cst_13 = arith.constant 1.06140542 : f32
    %24 = vector.broadcast %cst_13 : f32 to vector<16x128xf32>
    %25 = arith.mulf %24, %23 : vector<16x128xf32>
    %cst_14 = arith.constant -1.45315206 : f32
    %26 = vector.broadcast %cst_14 : f32 to vector<16x128xf32>
    %27 = arith.addf %25, %26 : vector<16x128xf32>
    %28 = arith.mulf %27, %23 : vector<16x128xf32>
    %cst_15 = arith.constant 1.42141378 : f32
    %29 = vector.broadcast %cst_15 : f32 to vector<16x128xf32>
    %30 = arith.addf %28, %29 : vector<16x128xf32>
    %31 = arith.mulf %30, %23 : vector<16x128xf32>
    %cst_16 = arith.constant -0.284496725 : f32
    %32 = vector.broadcast %cst_16 : f32 to vector<16x128xf32>
    %33 = arith.addf %31, %32 : vector<16x128xf32>
    %34 = arith.mulf %33, %23 : vector<16x128xf32>
    %cst_17 = arith.constant 0.254829586 : f32
    %35 = vector.broadcast %cst_17 : f32 to vector<16x128xf32>
    %36 = arith.addf %34, %35 : vector<16x128xf32>
    %37 = arith.mulf %36, %23 : vector<16x128xf32>
    %cst_18 = arith.constant 0.000000e+00 : f32
    %38 = vector.broadcast %cst_18 : f32 to vector<16x128xf32>
    %39 = arith.subf %38, %18 : vector<16x128xf32>
    %40 = arith.mulf %39, %18 : vector<16x128xf32>
    %41 = math.exp %40 : vector<16x128xf32>
    %42 = arith.mulf %37, %41 : vector<16x128xf32>
    %cst_19 = arith.constant 1.000000e+00 : f32
    %43 = vector.broadcast %cst_19 : f32 to vector<16x128xf32>
    %44 = arith.subf %43, %42 : vector<16x128xf32>
    %45 = arith.mulf %17, %44 : vector<16x128xf32>
    %cst_20 = arith.constant 1.000000e+00 : f32
    %46 = vector.broadcast %cst_20 : f32 to vector<16x128xf32>
    %47 = arith.addf %46, %45 : vector<16x128xf32>
    %48 = arith.mulf %10, %47 : vector<16x128xf32>
    %c0_21 = arith.constant 0 : index
    %c0_22 = arith.constant 0 : index
    %49 = vector.load %arg8[%c0_21, %c0_22] : memref<16x32xf32, #tpu.memory_space<vmem>>, vector<16x32xf32>
    %c0_23 = arith.constant 0 : index
    %c0_24 = arith.constant 0 : index
    %50 = vector.load %arg5[%c0_23, %c0_24] : memref<128x32xf32, #tpu.memory_space<vmem>>, vector<128x32xf32>
    %cst_25 = arith.constant dense<0.000000e+00> : vector<16x32xf32>
    %51 = tpu.matmul %48, %50, %cst_25 {dimension_numbers = #tpu.dot_dimension_numbers<[1], [0], [0], [1], [0, 0, 1, 1], [], []>} : vector<16x128xf32>, vector<128x32xf32>, vector<16x32xf32> -> vector<16x32xf32>
    %52 = arith.addf %49, %51 : vector<16x32xf32>
    %c0_26 = arith.constant 0 : index
    %c0_27 = arith.constant 0 : index
    %53 = vector.load %arg8[%c0_26, %c0_27] : memref<16x32xf32, #tpu.memory_space<vmem>>, vector<16x32xf32>
    tpu.vector_store %arg8[%c0_26, %c0_27], %52 {strides = array<i32>} : memref<16x32xf32, #tpu.memory_space<vmem>>, vector<16x32xf32>,
    %c0_i32_28 = arith.constant 0 : i32
    %54 = arith.cmpi eq, %arg1, %c0_i32_28 : i32
    %55 = arith.extui %54 : i1 to i32
    %c0_i32_29 = arith.constant 0 : i32
    %56 = arith.cmpi ne, %55, %c0_i32_29 : i32
    scf.if %56 {
      %c0_30 = arith.constant 0 : index
      %c0_31 = arith.constant 0 : index
      %57 = vector.load %arg8[%c0_30, %c0_31] : memref<16x32xf32, #tpu.memory_space<vmem>>, vector<16x32xf32>
      %c0_32 = arith.constant 0 : index
      %c0_33 = arith.constant 0 : index
      %58 = vector.load %arg7[%c0_32, %c0_33] : memref<16x32xf32, #tpu.memory_space<vmem>>, vector<16x32xf32>
      tpu.vector_store %arg7[%c0_32, %c0_33], %57 {strides = array<i32>} : memref<16x32xf32, #tpu.memory_space<vmem>>, vector<16x32xf32>,
    } else {
    }
    return
  }
  func.func @transform_0(%arg0: i32, %arg1: i32) -> (i32, i32) {
    %c0_i32 = arith.constant 0 : i32
    %c0_i32_0 = arith.constant 0 : i32
    return %arg0, %c0_i32 : i32, i32
  }
  func.func @transform_1(%arg0: i32, %arg1: i32) -> (i32, i32) {
    %c0_i32 = arith.constant 0 : i32
    %c0_i32_0 = arith.constant 0 : i32
    return %c0_i32, %arg1 : i32, i32
  }
  func.func @transform_2(%arg0: i32, %arg1: i32) -> (i32, i32) {
    %c0_i32 = arith.constant 0 : i32
    %c0_i32_0 = arith.constant 0 : i32
    return %c0_i32, %arg1 : i32, i32
  }
  func.func @transform_3(%arg0: i32, %arg1: i32) -> (i32, i32) {
    %c0_i32 = arith.constant 0 : i32
    %c0_i32_0 = arith.constant 0 : i32
    return %arg1, %c0_i32 : i32, i32
  }
  func.func @transform_4(%arg0: i32, %arg1: i32) -> (i32, i32) {
    %c0_i32 = arith.constant 0 : i32
    %c0_i32_0 = arith.constant 0 : i32
    %c0_i32_1 = arith.constant 0 : i32
    return %c0_i32, %c0_i32_0 : i32, i32
  }
  func.func @transform_5(%arg0: i32, %arg1: i32) -> (i32, i32) {
    %c0_i32 = arith.constant 0 : i32
    %c0_i32_0 = arith.constant 0 : i32
    return %arg0, %c0_i32 : i32, i32
  }
}

</mosaic_0001>

<llo_original>
// kernel: tpu_custom_call.1
$region0: #{tpu_custom_call.1}
  #allocation0 [shape = 'u32[]', space=smem, size = 0x4, offset = 0x4, fixed_abs, tag = 'smem constant byte address 0x4 - core index']
  #allocation1 [shape = 'u32[72,128]{1,0:T(1,128)}', space=vmem, size = 0x9000, scoped, tag = 'internal scratch']
  #allocation2 [shape = 'f32[16,32]{1,0:T(8,128)}', space=vmem, size = 0x2000, scoped, tag = 'scratch operand']
  %s0 = inlined_call_operand.vmem [shape: f32[16,32], index: 0, kind: input, shape index: {}]
  %s1 = inlined_call_operand.vmem [shape: f32[32,128], index: 1, kind: input, shape index: {}]
  %s2 = inlined_call_operand.vmem [shape: f32[1,128], index: 2, kind: input, shape index: {}]
  %s3 = inlined_call_operand.vmem [shape: f32[128,32], index: 3, kind: input, shape index: {}]
  %s4 = inlined_call_operand.vmem [shape: f32[1,32], index: 4, kind: input, shape index: {}]
  %s5 = inlined_call_operand.hbm [shape: f32[16,32], index: 5, kind: output, shape index: {}]
  %s6 = sld [smem:[#allocation0]]
  $region38: #{tpu_custom_call.1} parent=0
    _
  %s8 = ssub.s32 1, %s6
  %s9 = scalar_select 0, %s8, %s6
  $region1: #{tpu_custom_call.1} parent=0
    #allocation3 [shape = 'u8[8192]{0}', space=vmem, size = 0x2000, scoped, tag = 'output window, operand 0, single buffered']
    #allocation4 [shape = 's32[1]{0}', space=sflag, size = 0x4, scoped, tag = 'scoped memory for tpu_custom_call.1']
    %10 = vsyncpa [#allocation4], 0
    // Predicated region
    $region2: #{tpu_custom_call.1} parent=1 // pred_check
      _
    $region3: #{tpu_custom_call.1} parent=1 // pred_check_branch
      %12 = sbr.rel (0) target = $region5
    $region4: #{tpu_custom_call.1} parent=1 // pred_region
      _
    $region5: #{tpu_custom_call.1} parent=1 // pred_fallthru
      _
    // Predicated region
    $region6: #{tpu_custom_call.1} parent=1 // pred_check
      _
    $region7: #{tpu_custom_call.1} parent=1 // pred_check_branch
      %14 = sbr.rel (0) target = $region9
    $region8: #{tpu_custom_call.1} parent=1 // pred_region
      _
    $region9: #{tpu_custom_call.1} parent=1 // pred_fallthru
      _
    // Predicated region
    $region10: #{tpu_custom_call.1} parent=1 // pred_check
      _
    $region11: #{tpu_custom_call.1} parent=1 // pred_check_branch
      %16 = sbr.rel (0) target = $region13
    $region12: #{tpu_custom_call.1} parent=1 // pred_region
      _
    $region13: #{tpu_custom_call.1} parent=1 // pred_fallthru
      _
    // Predicated region
    $region14: #{tpu_custom_call.1} parent=1 // pred_check
      _
    $region15: #{tpu_custom_call.1} parent=1 // pred_check_branch
      %18 = sbr.rel (0) target = $region17
    $region16: #{tpu_custom_call.1} parent=1 // pred_region
      _
    $region17: #{tpu_custom_call.1} parent=1 // pred_fallthru
      _
    // Predicated region
    $region18: #{tpu_custom_call.1} parent=1 // pred_check
      _
    $region19: #{tpu_custom_call.1} parent=1 // pred_check_branch
      %20 = sbr.rel (0) target = $region21
    $region20: #{tpu_custom_call.1} parent=1 // pred_region
      _
    $region21: #{tpu_custom_call.1} parent=1 // pred_fallthru
      _
    %p21 = scmp.eq.s32.totalorder 0, 0
    // Predicated region
    $region22: #{tpu_custom_call.1} parent=1 // pred_check
      %p22 = pneg %p21
    $region23: #{tpu_custom_call.1} parent=1 // pred_check_branch
      %24 = sbr.rel (%p22) target = $region25
    $region24: #{tpu_custom_call.1} parent=1 // pred_region
      %v25 = vld [vmem:[%s4] sm:$0x1]
      %v27 = vperm.slane %v25, 0
      %v29 = vadd.f32 %v27, 0.0
      %vm30 = vcmask 261120
      %31 = vst.msk [vmem:[#allocation2] sm:$0xff] %vm30, %v29
      %32 = vst.msk [vmem:[#allocation2 + $0x8] sm:$0xff] %vm30, %v29
    $region25: #{tpu_custom_call.1} parent=1 // pred_fallthru
      _
    %v33 = vld [vmem:[%s0] sm:$0xff]
    %v34 = vld [vmem:[%s0 + $0x8] sm:$0xff]
    %v35 = vld [vmem:[%s1] sm:$0xff]
    %v36 = vld [vmem:[%s1 + $0x8] sm:$0xff]
    %v37 = vld [vmem:[%s1 + $0x10] sm:$0xff]
    %v38 = vld [vmem:[%s1 + $0x18] sm:$0xff]
    %v39 = vld [vmem:[%s2] sm:$0x1]
    %v41 = vperm.slane %v39, 0
    %vm43 = vcmask 261120
    %v45 = vsel %vm43, %v33, 0
    %v48 = vsel %vm43, %v34, 0
    %50 = vmatpush.msra.mxu0 0.0
    %51 = vmatpush.msra.mxu0 0.0
    %52 = vmatpush.msra.mxu0 0.0
    %53 = vmatpush.msra.mxu0 0.0
    %54 = vmatpush.msra.mxu0 0.0
    %55 = vmatpush.msra.mxu0 0.0
    %56 = vmatpush.msra.mxu0 0.0
    %57 = vmatpush.msra.mxu0 0.0
    %58 = vmatpush.msra.mxu0 0.0
    %59 = vmatpush.msra.mxu0 0.0
    %60 = vmatpush.msra.mxu0 0.0
    %61 = vmatpush.msra.mxu0 0.0
    %62 = vmatpush.msra.mxu0 %v38
    %63 = vmatpush.msra.mxu0 %v37
    %64 = vmatpush.msra.mxu0 %v36
    %65 = vmatpush.msra.mxu0 %v35
    %66 = vmatmul.f32.gmra.mxu0 %v45
    %v67 = vpop.f32.mrf.mxu0
    %v68 = vadd.f32 %v41, %v67
    %69 = vmatmul.f32.gmra.mxu0 %v48
    %v70 = vpop.f32.mrf.mxu0
    %v71 = vadd.f32 %v41, %v70
    %72 = vdwg.mxu0
    %v73 = vmul.f32 %v68, 0.5
    %v74 = vmul.f32 %v71, 0.5
    %v75 = vmul.f32 %v68, 0.70710677
    %v76 = vmul.f32 %v71, 0.70710677
    %vm77 = vcmp.ge.f32.partialorder %v75, 0.0
    %vm78 = vcmp.ge.f32.partialorder %v76, 0.0
    %v79 = vsel %vm77, 1.0, -1.0
    %v80 = vsel %vm78, 1.0, -1.0
    %v81 = vand.u32 2147483647, %v75
    %v82 = vand.u32 2147483647, %v76
    %v83 = vmul.f32 %v81, 0.3275911
    %v84 = vmul.f32 %v82, 0.3275911
    %v85 = vadd.f32 %v83, 1.0
    %v86 = vadd.f32 %v84, 1.0
    %v87 = vrcp.pop %v85
    %v88 = vmul.f32 %v85, %v87
    %v89 = vsub.f32 1.0, %v88
    %v90 = vmul.f32 %v87, %v89
    %v91 = vadd.f32 %v87, %v90
    %vm92 = vweird.f32 %v85
    %vm93 = vweird.f32 %v87
    %vm94 = vmor %vm92, %vm93
    %v95 = vsel %vm94, %v87, %v91
    %v96 = vand.u32 2147483647, %v85
    %vm97 = vcmp.eq.f32.partialorder %v96, 8.507059e+37
    %v98 = vand.u32 %v85, 2147483648
    %v99 = vor.u32 1.1754944e-38, %v98
    %v100 = vsel %vm97, %v99, %v95
    %v101 = vrcp.pop %v86
    %v102 = vmul.f32 %v86, %v101
    %v103 = vsub.f32 1.0, %v102
    %v104 = vmul.f32 %v101, %v103
    %v105 = vadd.f32 %v101, %v104
    %vm106 = vweird.f32 %v86
    %vm107 = vweird.f32 %v101
    %vm108 = vmor %vm106, %vm107
    %v109 = vsel %vm108, %v101, %v105
    %v110 = vand.u32 2147483647, %v86
    %vm111 = vcmp.eq.f32.partialorder %v110, 8.507059e+37
    %v112 = vand.u32 %v86, 2147483648
    %v113 = vor.u32 1.1754944e-38, %v112
    %v114 = vsel %vm111, %v113, %v109
    %v115 = vmul.f32 %v100, 1.0614054
    %v116 = vmul.f32 %v114, 1.0614054
    %v117 = vadd.f32 %v115, -1.4531521
    %v118 = vadd.f32 %v116, -1.4531521
    %v119 = vmul.f32 %v117, %v100
    %v120 = vmul.f32 %v118, %v114
    %v121 = vadd.f32 %v119, 1.4214138
    %v122 = vadd.f32 %v120, 1.4214138
    %v123 = vmul.f32 %v121, %v100
    %v124 = vmul.f32 %v122, %v114
    %v125 = vadd.f32 %v123, -0.28449672
    %v126 = vadd.f32 %v124, -0.28449672
    %v127 = vmul.f32 %v125, %v100
    %v128 = vmul.f32 %v126, %v114
    %v129 = vadd.f32 %v127, 0.2548296
    %v130 = vadd.f32 %v128, 0.2548296
    %v131 = vmul.f32 %v129, %v100
    %v132 = vmul.f32 %v130, %v114
    %v133 = vsub.f32 0.0, %v81
    %v134 = vsub.f32 0.0, %v82
    %v135 = vmul.f32 %v133, %v81
    %v136 = vmul.f32 %v134, %v82
    %v137 = vmul.f32 %v135, 1.442695
    %v138 = vpow.pop %v137
    %v139 = vmul.f32 %v136, 1.442695
    %v140 = vpow.pop %v139
    %v141 = vmul.f32 %v131, %v138
    %v142 = vmul.f32 %v132, %v140
    %v143 = vsub.f32 1.0, %v141
    %v144 = vsub.f32 1.0, %v142
    %v145 = vmul.f32 %v79, %v143
    %v146 = vmul.f32 %v80, %v144
    %v147 = vadd.f32 %v145, 1.0
    %v148 = vadd.f32 %v146, 1.0
    %v149 = vmul.f32 %v73, %v147
    %v150 = vmul.f32 %v74, %v148
    %v151 = vld [vmem:[#allocation2] sm:$0xff]
    %v152 = vld [vmem:[#allocation2 + $0x8] sm:$0xff]
    %v153 = vld [vmem:[%s3] sm:$0xff]
    %v154 = vld [vmem:[%s3 + $0x8] sm:$0xff]
    %v155 = vld [vmem:[%s3 + $0x10] sm:$0xff]
    %v156 = vld [vmem:[%s3 + $0x18] sm:$0xff]
    %v157 = vld [vmem:[%s3 + $0x20] sm:$0xff]
    %v158 = vld [vmem:[%s3 + $0x28] sm:$0xff]
    %v159 = vld [vmem:[%s3 + $0x30] sm:$0xff]
    %v160 = vld [vmem:[%s3 + $0x38] sm:$0xff]
    %v161 = vld [vmem:[%s3 + $0x40] sm:$0xff]
    %v162 = vld [vmem:[%s3 + $0x48] sm:$0xff]
    %v163 = vld [vmem:[%s3 + $0x50] sm:$0xff]
    %v164 = vld [vmem:[%s3 + $0x58] sm:$0xff]
    %v165 = vld [vmem:[%s3 + $0x60] sm:$0xff]
    %v166 = vld [vmem:[%s3 + $0x68] sm:$0xff]
    %v167 = vld [vmem:[%s3 + $0x70] sm:$0xff]
    %v168 = vld [vmem:[%s3 + $0x78] sm:$0xff]
    %169 = vmatpush.msra.mxu0 %v168
    %170 = vmatpush.msra.mxu0 %v167
    %171 = vmatpush.msra.mxu0 %v166
    %172 = vmatpush.msra.mxu0 %v165
    %173 = vmatpush.msra.mxu0 %v164
    %174 = vmatpush.msra.mxu0 %v163
    %175 = vmatpush.msra.mxu0 %v162
    %176 = vmatpush.msra.mxu0 %v161
    %177 = vmatpush.msra.mxu0 %v160
    %178 = vmatpush.msra.mxu0 %v159
    %179 = vmatpush.msra.mxu0 %v158
    %180 = vmatpush.msra.mxu0 %v157
    %181 = vmatpush.msra.mxu0 %v156
    %182 = vmatpush.msra.mxu0 %v155
    %183 = vmatpush.msra.mxu0 %v154
    %184 = vmatpush.msra.mxu0 %v153
    %185 = vmatmul.f32.gmra.mxu0 %v149
    %v186 = vpop.f32.mrf.mxu0
    %v187 = vadd.f32 0.0, %v186
    %188 = vmatmul.f32.gmra.mxu0 %v150
    %v189 = vpop.f32.mrf.mxu0
    %v190 = vadd.f32 0.0, %v189
    %191 = vdwg.mxu0
    %v192 = vadd.f32 %v151, %v187
    %v193 = vadd.f32 %v152, %v190
    %194 = vst.msk [vmem:[#allocation2] sm:$0xff] %vm43, %v192
    %195 = vst.msk [vmem:[#allocation2 + $0x8] sm:$0xff] %vm43, %v193
    // Predicated region
    $region26: #{tpu_custom_call.1} parent=1 // pred_check
      %p196 = pneg %p21
    $region27: #{tpu_custom_call.1} parent=1 // pred_check_branch
      %198 = sbr.rel (%p196) target = $region29
    $region28: #{tpu_custom_call.1} parent=1 // pred_region
      %v199 = vld [vmem:[#allocation2] sm:$0xff]
      %v200 = vld [vmem:[#allocation2 + $0x8] sm:$0xff]
      %201 = vst.msk [vmem:[#allocation3] sm:$0xff] %vm43, %v199
      %202 = vst.msk [vmem:[#allocation3 + $0x8] sm:$0xff] %vm43, %v200
    $region29: #{tpu_custom_call.1} parent=1 // pred_fallthru
      _
    // Predicated region
    $region30: #{tpu_custom_call.1} parent=1 // pred_check
      _
    $region31: #{tpu_custom_call.1} parent=1 // pred_check_branch
      %204 = sbr.rel (0) target = $region33
    $region32: #{tpu_custom_call.1} parent=1 // pred_region
      %206 = vsyncadd [#allocation4], 0
      %s207 = sshll.u32 [#allocation3], 4
      %s208 = int_to_ptr.vmem [resolvable:$true] %s207
      %s209 = sshll.u32 %s5, 4
      %s210 = int_to_ptr.hbm [resolvable:$true] %s209
      %215 = dma.vmem_to_hbm [thread:$0]  %s208, 256, %s210, [#allocation4], 128, 128, 8
    $region33: #{tpu_custom_call.1} parent=1 // pred_fallthru
      _
    // Predicated region
    $region34: #{tpu_custom_call.1} parent=1 // pred_check
      _
    $region35: #{tpu_custom_call.1} parent=1 // pred_check_branch
      %217 = sbr.rel (0) target = $region37
    $region36: #{tpu_custom_call.1} parent=1 // pred_region
      %219 = dma.done [#allocation4], 256
    $region37: #{tpu_custom_call.1} parent=1 // pred_fallthru
      _
    %220 = vsyncpa [#allocation4], 1

</llo_original>
